<compile_context>
chip_gen: v7x
topology: tpu7x:2x2x1
jax: 0.10.0
libtpu: 0.0.40
codegen_flags: <defaults>
</compile_context>

<pallas_src>
import functools

import jax
import jax.numpy as jnp
import numpy as np
from jax.experimental import pallas as pl
from jax.experimental.pallas import tpu as pltpu


# ----------------------------------------------------------------------------- kernel
def _make_fused_rnn_kernel(num_layers: int, seq_len: int, batch: int):
    """Fused forward kernel for a fixed (static) number of stacked RNN layers.

    Ref layout (inputs, then outputs):
      x_ref      : (T*B, F)            time-major, flattened input sequence
      h0_ref     : (L, B, H)           initial hidden states
      w_ih_l     : (F_in, H) per layer (pre-transposed so lhs @ w works)
      w_hh_l     : (H, H)    per layer
      w_out      : (H, O)
      states_ref : (T*B, H)            last layer's hidden-state sequence (time-major)
      out_ref    : (T*B, O)            readout sequence (time-major)
      hT_ref     : (L, B, H)           final hidden state of every layer
    """
    T, B = seq_len, batch

    def kernel(*refs):
        x_ref, h0_ref = refs[0], refs[1]
        w_refs = refs[2: 2 + 2 * num_layers]
        w_out_ref = refs[2 + 2 * num_layers]
        states_ref, out_ref, hT_ref = refs[3 + 2 * num_layers:]

        # time-major (T*B, F_in) LHS for the hoisted input projection, kept in f32 vregs
        lhs = x_ref[...].astype(jnp.float32)

        for layer in range(num_layers):
            w_ih = w_refs[2 * layer][...]          # (F_in, H)
            w_hh = w_refs[2 * layer + 1][...]      # (H,   H)

            # ---- hoisted non-recurrent projection for ALL timesteps: one MXU push --------
            xin = jnp.dot(lhs, w_ih, preferred_element_type=jnp.float32)   # (T*B, H)

            # ---- serial recurrence: per step only (B,H)@(H,H) + add + tanh ---------------
            h = h0_ref[layer].astype(jnp.float32)                          # (B, H)
            hs = []
            for t in range(T):   # static unroll (T small & static -> full LLO visibility)
                h = jnp.tanh(
                    xin[t * B:(t + 1) * B, :]
                    + jnp.dot(h, w_hh, preferred_element_type=jnp.float32))
                hs.append(h)     # keep states in vregs; no per-step masked stores
            hT_ref[layer] = h.astype(hT_ref.dtype)                          # once per layer

            # time-major (T*B, H) state block in f32 vregs: feeds next layer / readout
            lhs = jnp.concatenate(hs, axis=0)

        # ---- single bulk store of the state sequence + fused bias-free readout -----------
        states_ref[...] = lhs.astype(states_ref.dtype)
        out_ref[...] = jnp.dot(lhs, w_out_ref[...],
                               preferred_element_type=jnp.float32).astype(out_ref.dtype)

    return kernel


# ----------------------------------------------------------------------------- wrapper
@functools.partial(jax.jit, static_argnames=("num_layers",))
def rnn_model_climate_forward(params, input_sequence, initial_states_s0, *, num_layers=1):
    """Reproduces RNNModelClimate.forward (batch_first=True, bias=False everywhere).

    Returns:
      sequence_of_states : [batch, seq_len, hidden]
      output_sequence    : [batch, seq_len, output_size]
      hstate_at_T        : [num_layers, batch, hidden]
    """
    B, T, F = input_sequence.shape
    H = initial_states_s0.shape[-1]
    O = params["w_out"].shape[0]
    dtype = input_sequence.dtype

    weights = []
    for l in range(num_layers):
        weights.append(params[f"w_ih_l{l}"].T)   # (F_in, H)
        weights.append(params[f"w_hh_l{l}"].T)   # (H,   H)
    weights.append(params["w_out"].T)            # (H,   O)

    # time-major flattened LHS for the hoisted projection (tiny relayout, done by XLA)
    x_tm = jnp.swapaxes(input_sequence, 0, 1).reshape(T * B, F)

    # advisory cost for XLA scheduling around this ~us-scale custom call
    flops = 0
    for l in range(num_layers):
        f_in = F if l == 0 else H
        flops += 2 * T * B * f_in * H + 2 * T * B * H * H
    flops += 2 * T * B * H * O
    transcendentals = num_layers * T * B * H
    bytes_accessed = (
        4 * (T * B * F + num_layers * B * H)                 # inputs
        + sum(4 * int(np.prod(w.shape)) for w in weights)    # weights
        + 4 * (T * B * H + T * B * O + num_layers * B * H))  # outputs

    vmem = pl.BlockSpec(memory_space=pltpu.MemorySpace.VMEM)
    states_tm, out_tm, hT = pl.pallas_call(
        _make_fused_rnn_kernel(num_layers, T, B),
        out_shape=(
            jax.ShapeDtypeStruct((T * B, H), dtype),
            jax.ShapeDtypeStruct((T * B, O), dtype),
            jax.ShapeDtypeStruct((num_layers, B, H), dtype),
        ),
        in_specs=[vmem] * (2 + len(weights)),
        out_specs=(vmem, vmem, vmem),
        cost_estimate=pl.CostEstimate(flops=flops,
                                      transcendentals=transcendentals,
                                      bytes_accessed=bytes_accessed),
    )(x_tm, initial_states_s0, *weights)

    # tiny time-major -> batch-major relayout of the sequence outputs (wrapper side, per review)
    sequence_of_states = jnp.swapaxes(states_tm.reshape(T, B, H), 0, 1)
    output_sequence = jnp.swapaxes(out_tm.reshape(T, B, O), 0, 1)
    return sequence_of_states, output_sequence, hT


# ----------------------------------------------------------------------------- params / reference
def init_params(key, input_size, hidden_size, output_size, num_layers):
    """PyTorch-style init: U(-1/sqrt(H), 1/sqrt(H)) for every weight (no biases)."""
    bound = 1.0 / np.sqrt(hidden_size)
    params = {}
    for l in range(num_layers):
        in_feat = input_size if l == 0 else hidden_size
        key, k1, k2 = jax.random.split(key, 3)
        params[f"w_ih_l{l}"] = jax.random.uniform(
            k1, (hidden_size, in_feat), jnp.float32, -bound, bound)
        params[f"w_hh_l{l}"] = jax.random.uniform(
            k2, (hidden_size, hidden_size), jnp.float32, -bound, bound)
    key, k3 = jax.random.split(key)
    params["w_out"] = jax.random.uniform(
        k3, (output_size, hidden_size), jnp.float32, -bound, bound)
    return params


def reference_forward(params, x_bsf, s0, num_layers):
    """Pure-JAX reference (lax.scan) matching torch.nn.RNN(bias=False) + Linear(bias=False)."""
    layer_in = x_bsf
    hTs = []
    for l in range(num_layers):
        w_ih_t = params[f"w_ih_l{l}"].T
        w_hh_t = params[f"w_hh_l{l}"].T

        def step(h, x_t):
            h_new = jnp.tanh(x_t @ w_ih_t + h @ w_hh_t)
            return h_new, h_new

        hT, states = jax.lax.scan(step, s0[l], jnp.swapaxes(layer_in, 0, 1))
        layer_in = jnp.swapaxes(states, 0, 1)
        hTs.append(hT)
    out = layer_in @ params["w_out"].T
    return layer_in, out, jnp.stack(hTs, axis=0)


# ----------------------------------------------------------------------------- main
if __name__ == "__main__":
    batch, seq_len = 2, 8
    input_size, hidden_size, output_size = 4, 32, 4

    for num_layers in (1, 2):   # module default is 1; also exercise the stacked path
        key = jax.random.PRNGKey(0)
        key, kx, ks0, kp = jax.random.split(key, 4)

        params = init_params(kp, input_size, hidden_size, output_size, num_layers)
        x = jax.random.normal(kx, (batch, seq_len, input_size), jnp.float32)
        # s0_nature = 'random_': uniform(-0.75, 0.75); train_s0 irrelevant for forward pass.
        s0 = jax.random.uniform(ks0, (num_layers, batch, hidden_size), jnp.float32,
                                -0.75, 0.75)

        seq_states, out_seq, hT = rnn_model_climate_forward(
            params, x, s0, num_layers=num_layers)
        jax.block_until_ready((seq_states, out_seq, hT))

        # sanity check against pure-JAX reference
        ref_states, ref_out, ref_hT = reference_forward(params, x, s0, num_layers)
        np.testing.assert_allclose(np.asarray(seq_states), np.asarray(ref_states),
                                   atol=1e-5, rtol=1e-5)
        np.testing.assert_allclose(np.asarray(out_seq), np.asarray(ref_out),
                                   atol=1e-5, rtol=1e-5)
        np.testing.assert_allclose(np.asarray(hT), np.asarray(ref_hT),
                                   atol=1e-5, rtol=1e-5)

        assert seq_states.shape == (batch, seq_len, hidden_size)
        assert out_seq.shape == (batch, seq_len, output_size)
        assert hT.shape == (num_layers, batch, hidden_size)

    print("KERNEL_OK")
</pallas_src>

<mosaic_0001>
module attributes {stable_mosaic.version = 11 : i64} {
  func.func @kernel(%arg0: memref<16x4xf32, #tpu.memory_space<vmem>>, %arg1: memref<1x2x32xf32, #tpu.memory_space<vmem>>, %arg2: memref<4x32xf32, #tpu.memory_space<vmem>>, %arg3: memref<32x32xf32, #tpu.memory_space<vmem>>, %arg4: memref<32x4xf32, #tpu.memory_space<vmem>>, %arg5: memref<16x32xf32, #tpu.memory_space<vmem>>, %arg6: memref<16x4xf32, #tpu.memory_space<vmem>>, %arg7: memref<1x2x32xf32, #tpu.memory_space<vmem>>) attributes {dimension_semantics = [], scalar_prefetch = 0 : i64, scratch_operands = 0 : i64, tpu.core_type = #tpu.core_type<tc>} {
    %c0 = arith.constant 0 : index
    %c0_0 = arith.constant 0 : index
    %0 = vector.load %arg0[%c0, %c0_0] : memref<16x4xf32, #tpu.memory_space<vmem>>, vector<16x4xf32>
    %c0_1 = arith.constant 0 : index
    %c0_2 = arith.constant 0 : index
    %1 = vector.load %arg2[%c0_1, %c0_2] : memref<4x32xf32, #tpu.memory_space<vmem>>, vector<4x32xf32>
    %c0_3 = arith.constant 0 : index
    %c0_4 = arith.constant 0 : index
    %2 = vector.load %arg3[%c0_3, %c0_4] : memref<32x32xf32, #tpu.memory_space<vmem>>, vector<32x32xf32>
    %cst = arith.constant dense<0.000000e+00> : vector<16x32xf32>
    %3 = tpu.matmul %0, %1, %cst {dimension_numbers = #tpu.dot_dimension_numbers<[1], [0], [0], [1], [0, 0, 1, 1], [], []>} : vector<16x4xf32>, vector<4x32xf32>, vector<16x32xf32> -> vector<16x32xf32>
    %c0_5 = arith.constant 0 : index
    %c0_6 = arith.constant 0 : index
    %c0_7 = arith.constant 0 : index
    %4 = vector.load %arg1[%c0_5, %c0_6, %c0_7] : memref<1x2x32xf32, #tpu.memory_space<vmem>>, vector<1x2x32xf32>
    %5 = vector.shape_cast %4 : vector<1x2x32xf32> to vector<2x32xf32>
    %6 = vector.extract_strided_slice %3 {offsets = [0, 0], sizes = [2, 32], strides = [1, 1]} : vector<16x32xf32> to vector<2x32xf32>
    %cst_8 = arith.constant dense<0.000000e+00> : vector<2x32xf32>
    %7 = tpu.matmul %5, %2, %cst_8 {dimension_numbers = #tpu.dot_dimension_numbers<[1], [0], [0], [1], [0, 0, 1, 1], [], []>} : vector<2x32xf32>, vector<32x32xf32>, vector<2x32xf32> -> vector<2x32xf32>
    %8 = arith.addf %6, %7 : vector<2x32xf32>
    %9 = math.tanh %8 : vector<2x32xf32>
    %10 = vector.extract_strided_slice %3 {offsets = [2, 0], sizes = [2, 32], strides = [1, 1]} : vector<16x32xf32> to vector<2x32xf32>
    %cst_9 = arith.constant dense<0.000000e+00> : vector<2x32xf32>
    %11 = tpu.matmul %9, %2, %cst_9 {dimension_numbers = #tpu.dot_dimension_numbers<[1], [0], [0], [1], [0, 0, 1, 1], [], []>} : vector<2x32xf32>, vector<32x32xf32>, vector<2x32xf32> -> vector<2x32xf32>
    %12 = arith.addf %10, %11 : vector<2x32xf32>
    %13 = math.tanh %12 : vector<2x32xf32>
    %14 = vector.extract_strided_slice %3 {offsets = [4, 0], sizes = [2, 32], strides = [1, 1]} : vector<16x32xf32> to vector<2x32xf32>
    %cst_10 = arith.constant dense<0.000000e+00> : vector<2x32xf32>
    %15 = tpu.matmul %13, %2, %cst_10 {dimension_numbers = #tpu.dot_dimension_numbers<[1], [0], [0], [1], [0, 0, 1, 1], [], []>} : vector<2x32xf32>, vector<32x32xf32>, vector<2x32xf32> -> vector<2x32xf32>
    %16 = arith.addf %14, %15 : vector<2x32xf32>
    %17 = math.tanh %16 : vector<2x32xf32>
    %18 = vector.extract_strided_slice %3 {offsets = [6, 0], sizes = [2, 32], strides = [1, 1]} : vector<16x32xf32> to vector<2x32xf32>
    %cst_11 = arith.constant dense<0.000000e+00> : vector<2x32xf32>
    %19 = tpu.matmul %17, %2, %cst_11 {dimension_numbers = #tpu.dot_dimension_numbers<[1], [0], [0], [1], [0, 0, 1, 1], [], []>} : vector<2x32xf32>, vector<32x32xf32>, vector<2x32xf32> -> vector<2x32xf32>
    %20 = arith.addf %18, %19 : vector<2x32xf32>
    %21 = math.tanh %20 : vector<2x32xf32>
    %22 = vector.extract_strided_slice %3 {offsets = [8, 0], sizes = [2, 32], strides = [1, 1]} : vector<16x32xf32> to vector<2x32xf32>
    %cst_12 = arith.constant dense<0.000000e+00> : vector<2x32xf32>
    %23 = tpu.matmul %21, %2, %cst_12 {dimension_numbers = #tpu.dot_dimension_numbers<[1], [0], [0], [1], [0, 0, 1, 1], [], []>} : vector<2x32xf32>, vector<32x32xf32>, vector<2x32xf32> -> vector<2x32xf32>
    %24 = arith.addf %22, %23 : vector<2x32xf32>
    %25 = math.tanh %24 : vector<2x32xf32>
    %26 = vector.extract_strided_slice %3 {offsets = [10, 0], sizes = [2, 32], strides = [1, 1]} : vector<16x32xf32> to vector<2x32xf32>
    %cst_13 = arith.constant dense<0.000000e+00> : vector<2x32xf32>
    %27 = tpu.matmul %25, %2, %cst_13 {dimension_numbers = #tpu.dot_dimension_numbers<[1], [0], [0], [1], [0, 0, 1, 1], [], []>} : vector<2x32xf32>, vector<32x32xf32>, vector<2x32xf32> -> vector<2x32xf32>
    %28 = arith.addf %26, %27 : vector<2x32xf32>
    %29 = math.tanh %28 : vector<2x32xf32>
    %30 = vector.extract_strided_slice %3 {offsets = [12, 0], sizes = [2, 32], strides = [1, 1]} : vector<16x32xf32> to vector<2x32xf32>
    %cst_14 = arith.constant dense<0.000000e+00> : vector<2x32xf32>
    %31 = tpu.matmul %29, %2, %cst_14 {dimension_numbers = #tpu.dot_dimension_numbers<[1], [0], [0], [1], [0, 0, 1, 1], [], []>} : vector<2x32xf32>, vector<32x32xf32>, vector<2x32xf32> -> vector<2x32xf32>
    %32 = arith.addf %30, %31 : vector<2x32xf32>
    %33 = math.tanh %32 : vector<2x32xf32>
    %34 = vector.extract_strided_slice %3 {offsets = [14, 0], sizes = [2, 32], strides = [1, 1]} : vector<16x32xf32> to vector<2x32xf32>
    %cst_15 = arith.constant dense<0.000000e+00> : vector<2x32xf32>
    %35 = tpu.matmul %33, %2, %cst_15 {dimension_numbers = #tpu.dot_dimension_numbers<[1], [0], [0], [1], [0, 0, 1, 1], [], []>} : vector<2x32xf32>, vector<32x32xf32>, vector<2x32xf32> -> vector<2x32xf32>
    %36 = arith.addf %34, %35 : vector<2x32xf32>
    %37 = math.tanh %36 : vector<2x32xf32>
    %c0_16 = arith.constant 0 : index
    %c0_17 = arith.constant 0 : index
    %c0_18 = arith.constant 0 : index
    %38 = vector.load %arg7[%c0_16, %c0_17, %c0_18] : memref<1x2x32xf32, #tpu.memory_space<vmem>>, vector<1x2x32xf32>
    %39 = vector.shape_cast %38 : vector<1x2x32xf32> to vector<2x32xf32>
    %40 = vector.shape_cast %37 : vector<2x32xf32> to vector<1x2x32xf32>
    tpu.vector_store %arg7[%c0_16, %c0_17, %c0_18], %40 {strides = array<i32>} : memref<1x2x32xf32, #tpu.memory_space<vmem>>, vector<1x2x32xf32>,
    %41 = tpu.concatenate %9, %13, %17, %21, %25, %29, %33, %37 in 0 : vector<2x32xf32>, vector<2x32xf32>, vector<2x32xf32>, vector<2x32xf32>, vector<2x32xf32>, vector<2x32xf32>, vector<2x32xf32>, vector<2x32xf32> -> vector<16x32xf32>
    %c0_19 = arith.constant 0 : index
    %c0_20 = arith.constant 0 : index
    %42 = vector.load %arg5[%c0_19, %c0_20] : memref<16x32xf32, #tpu.memory_space<vmem>>, vector<16x32xf32>
    tpu.vector_store %arg5[%c0_19, %c0_20], %41 {strides = array<i32>} : memref<16x32xf32, #tpu.memory_space<vmem>>, vector<16x32xf32>,
    %c0_21 = arith.constant 0 : index
    %c0_22 = arith.constant 0 : index
    %43 = vector.load %arg4[%c0_21, %c0_22] : memref<32x4xf32, #tpu.memory_space<vmem>>, vector<32x4xf32>
    %cst_23 = arith.constant dense<0.000000e+00> : vector<16x4xf32>
    %44 = tpu.matmul %41, %43, %cst_23 {dimension_numbers = #tpu.dot_dimension_numbers<[1], [0], [0], [1], [0, 0, 1, 1], [], []>} : vector<16x32xf32>, vector<32x4xf32>, vector<16x4xf32> -> vector<16x4xf32>
    %c0_24 = arith.constant 0 : index
    %c0_25 = arith.constant 0 : index
    %45 = vector.load %arg6[%c0_24, %c0_25] : memref<16x4xf32, #tpu.memory_space<vmem>>, vector<16x4xf32>
    tpu.vector_store %arg6[%c0_24, %c0_25], %44 {strides = array<i32>} : memref<16x4xf32, #tpu.memory_space<vmem>>, vector<16x4xf32>,
    return
  }
}

</mosaic_0001>

<llo_original>
// kernel: rnn_model_climate_forward.1
$region0: #{rnn_model_climate_forward.1}
  #allocation0 [shape = 'u32[]', space=smem, size = 0x4, offset = 0x4, fixed_abs, tag = 'smem constant byte address 0x4 - core index']
  #allocation1 [shape = 'u32[144,128]{1,0:T(1,128)}', space=vmem, size = 0x12000, scoped, tag = 'internal scratch']
  %s0 = inlined_call_operand.vmem [shape: f32[16,4], index: 0, kind: input, shape index: {}]
  %s1 = inlined_call_operand.vmem [shape: f32[1,2,32], index: 1, kind: input, shape index: {}]
  %s2 = inlined_call_operand.vmem [shape: f32[4,32], index: 2, kind: input, shape index: {}]
  %s3 = inlined_call_operand.vmem [shape: f32[32,32], index: 3, kind: input, shape index: {}]
  %s4 = inlined_call_operand.vmem [shape: f32[32,4], index: 4, kind: input, shape index: {}]
  %s5 = inlined_call_operand.vmem [shape: f32[16,32], index: 5, kind: output, shape index: {0}]
  %s6 = inlined_call_operand.vmem [shape: f32[16,4], index: 6, kind: output, shape index: {1}]
  %s7 = inlined_call_operand.hbm [shape: f32[1,2,32], index: 7, kind: output, shape index: {2}]
  %8 = xla_tuple %s5, %s6, %s7
  %s9 = sld [smem:[#allocation0]]
  $region46: #{rnn_model_climate_forward.1} parent=0
    _
  %s11 = ssub.s32 1, %s9
  %s12 = scalar_select 0, %s11, %s9
  $region1: #{rnn_model_climate_forward.1} parent=0
    #allocation2 [shape = 'u8[1024]{0}', space=vmem, size = 0x400, scoped, tag = 'output window, operand 2, single buffered']
    #allocation3 [shape = 's32[1]{0}', space=sflag, size = 0x4, scoped, tag = 'scoped memory for rnn_model_climate_forward.1']
    %13 = vsyncpa [#allocation3], 0
    // Predicated region
    $region2: #{rnn_model_climate_forward.1} parent=1 // pred_check
      _
    $region3: #{rnn_model_climate_forward.1} parent=1 // pred_check_branch
      %15 = sbr.rel (0) target = $region5
    $region4: #{rnn_model_climate_forward.1} parent=1 // pred_region
      _
    $region5: #{rnn_model_climate_forward.1} parent=1 // pred_fallthru
      _
    // Predicated region
    $region6: #{rnn_model_climate_forward.1} parent=1 // pred_check
      _
    $region7: #{rnn_model_climate_forward.1} parent=1 // pred_check_branch
      %17 = sbr.rel (0) target = $region9
    $region8: #{rnn_model_climate_forward.1} parent=1 // pred_region
      _
    $region9: #{rnn_model_climate_forward.1} parent=1 // pred_fallthru
      _
    // Predicated region
    $region10: #{rnn_model_climate_forward.1} parent=1 // pred_check
      _
    $region11: #{rnn_model_climate_forward.1} parent=1 // pred_check_branch
      %19 = sbr.rel (0) target = $region13
    $region12: #{rnn_model_climate_forward.1} parent=1 // pred_region
      _
    $region13: #{rnn_model_climate_forward.1} parent=1 // pred_fallthru
      _
    // Predicated region
    $region14: #{rnn_model_climate_forward.1} parent=1 // pred_check
      _
    $region15: #{rnn_model_climate_forward.1} parent=1 // pred_check_branch
      %21 = sbr.rel (0) target = $region17
    $region16: #{rnn_model_climate_forward.1} parent=1 // pred_region
      _
    $region17: #{rnn_model_climate_forward.1} parent=1 // pred_fallthru
      _
    // Predicated region
    $region18: #{rnn_model_climate_forward.1} parent=1 // pred_check
      _
    $region19: #{rnn_model_climate_forward.1} parent=1 // pred_check_branch
      %23 = sbr.rel (0) target = $region21
    $region20: #{rnn_model_climate_forward.1} parent=1 // pred_region
      _
    $region21: #{rnn_model_climate_forward.1} parent=1 // pred_fallthru
      _
    %v24 = vld [vmem:[%s0] sm:$0xff]
    %v25 = vld [vmem:[%s0 + $0x8] sm:$0xff]
    %v26 = vld [vmem:[%s2] sm:$0xf]
    %v27 = vld [vmem:[%s3] sm:$0xff]
    %v28 = vld [vmem:[%s3 + $0x8] sm:$0xff]
    %v29 = vld [vmem:[%s3 + $0x10] sm:$0xff]
    %v30 = vld [vmem:[%s3 + $0x18] sm:$0xff]
    %vm31 = vcmask 31744
    %v33 = vsel %vm31, %v24, 0
    %v36 = vsel %vm31, %v25, 0
    %vm38 = vcmask 1043456
    %v40 = vsel %vm38, %v26, 0
    %42 = vmatprep.subr.mxu0 0.0
    %43 = vmatpush1.msra.mxu0 %v40
    %44 = vmatprep.subr.mxu0 0.0
    %45 = vmatpush1.msra.mxu0 0.0
    %46 = vmatprep.subr.mxu0 0.0
    %47 = vmatpush1.msra.mxu0 0.0
    %48 = vmatprep.subr.mxu0 0.0
    %49 = vmatpush1.msra.mxu0 0.0
    %50 = vmatprep.subr.mxu0 0.0
    %51 = vmatpush1.msra.mxu0 0.0
    %52 = vmatprep.subr.mxu0 0.0
    %53 = vmatpush1.msra.mxu0 0.0
    %54 = vmatprep.subr.mxu0 0.0
    %55 = vmatpush1.msra.mxu0 0.0
    %56 = vmatprep.subr.mxu0 0.0
    %57 = vmatpush1.msra.mxu0 0.0
    %58 = vmatprep.subr.mxu0 0.0
    %59 = vmatpush1.msra.mxu0 0.0
    %60 = vmatprep.subr.mxu0 0.0
    %61 = vmatpush1.msra.mxu0 0.0
    %62 = vmatprep.subr.mxu0 0.0
    %63 = vmatpush1.msra.mxu0 0.0
    %64 = vmatprep.subr.mxu0 0.0
    %65 = vmatpush1.msra.mxu0 0.0
    %66 = vmatprep.subr.mxu0 0.0
    %67 = vmatpush1.msra.mxu0 0.0
    %68 = vmatprep.subr.mxu0 0.0
    %69 = vmatpush1.msra.mxu0 0.0
    %70 = vmatprep.subr.mxu0 0.0
    %71 = vmatpush1.msra.mxu0 0.0
    %72 = vmatprep.subr.mxu0 0.0
    %73 = vmatpush1.msra.mxu0 0.0
    %74 = vmatprep.subr.mxu0 0.0
    %75 = vmatpush1.msra.mxu0 0.0
    %76 = vmatprep.subr.mxu0 0.0
    %77 = vmatpush1.msra.mxu0 0.0
    %78 = vmatprep.subr.mxu0 0.0
    %79 = vmatpush1.msra.mxu0 0.0
    %80 = vmatprep.subr.mxu0 0.0
    %81 = vmatpush1.msra.mxu0 0.0
    %82 = vmatprep.subr.mxu0 0.0
    %83 = vmatpush1.msra.mxu0 0.0
    %84 = vmatprep.subr.mxu0 0.0
    %85 = vmatpush1.msra.mxu0 0.0
    %86 = vmatprep.subr.mxu0 0.0
    %87 = vmatpush1.msra.mxu0 0.0
    %88 = vmatprep.subr.mxu0 0.0
    %89 = vmatpush1.msra.mxu0 0.0
    %90 = vmatprep.subr.mxu0 0.0
    %91 = vmatpush1.msra.mxu0 0.0
    %92 = vmatprep.subr.mxu0 0.0
    %93 = vmatpush1.msra.mxu0 0.0
    %94 = vmatprep.subr.mxu0 0.0
    %95 = vmatpush1.msra.mxu0 0.0
    %96 = vmatprep.subr.mxu0 0.0
    %97 = vmatpush1.msra.mxu0 0.0
    %98 = vmatprep.subr.mxu0 0.0
    %99 = vmatpush1.msra.mxu0 0.0
    %100 = vmatprep.subr.mxu0 0.0
    %101 = vmatpush1.msra.mxu0 0.0
    %102 = vmatprep.subr.mxu0 0.0
    %103 = vmatpush1.msra.mxu0 0.0
    %104 = vmatprep.subr.mxu0 0.0
    %105 = vmatpush1.msra.mxu0 0.0
    %106 = vmatprep.mubr.f32.mxu0 0.0
    %107 = vmatmul.mubr.f32.gmra.mrb[0].mxu0 %v33
    %v108 = vpop.f32.mrb[0].mxu0
    %v109 = vadd.f32 0.0, %v108
    %v110 = vpop.f32.mrb[0].mxu0
    %111 = vmatprep.mubr.f32.mxu0 0.0
    %112 = vmatmul.mubr.f32.gmra.mrb[0].mxu0 %v36
    %v113 = vpop.f32.mrb[0].mxu0
    %v114 = vadd.f32 0.0, %v113
    %v115 = vpop.f32.mrb[0].mxu0
    %116 = vdwg.mxu0
    %v117 = vld [vmem:[%s1] sm:$0x3]
    %vm118 = vcmask 261120
    %v120 = vsel %vm118, %v117, 0
    %122 = vmatprep.subr.mxu0 0.0
    %123 = vmatpush1.msra.mxu0 %v27
    %124 = vmatprep.subr.mxu0 0.0
    %125 = vmatpush1.msra.mxu0 %v28
    %126 = vmatprep.subr.mxu0 0.0
    %127 = vmatpush1.msra.mxu0 %v29
    %128 = vmatprep.subr.mxu0 0.0
    %129 = vmatpush1.msra.mxu0 %v30
    %130 = vmatprep.subr.mxu0 0.0
    %131 = vmatpush1.msra.mxu0 0.0
    %132 = vmatprep.subr.mxu0 0.0
    %133 = vmatpush1.msra.mxu0 0.0
    %134 = vmatprep.subr.mxu0 0.0
    %135 = vmatpush1.msra.mxu0 0.0
    %136 = vmatprep.subr.mxu0 0.0
    %137 = vmatpush1.msra.mxu0 0.0
    %138 = vmatprep.subr.mxu0 0.0
    %139 = vmatpush1.msra.mxu0 0.0
    %140 = vmatprep.subr.mxu0 0.0
    %141 = vmatpush1.msra.mxu0 0.0
    %142 = vmatprep.subr.mxu0 0.0
    %143 = vmatpush1.msra.mxu0 0.0
    %144 = vmatprep.subr.mxu0 0.0
    %145 = vmatpush1.msra.mxu0 0.0
    %146 = vmatprep.subr.mxu0 0.0
    %147 = vmatpush1.msra.mxu0 0.0
    %148 = vmatprep.subr.mxu0 0.0
    %149 = vmatpush1.msra.mxu0 0.0
    %150 = vmatprep.subr.mxu0 0.0
    %151 = vmatpush1.msra.mxu0 0.0
    %152 = vmatprep.subr.mxu0 0.0
    %153 = vmatpush1.msra.mxu0 0.0
    %154 = vmatprep.subr.mxu0 0.0
    %155 = vmatpush1.msra.mxu0 0.0
    %156 = vmatprep.subr.mxu0 0.0
    %157 = vmatpush1.msra.mxu0 0.0
    %158 = vmatprep.subr.mxu0 0.0
    %159 = vmatpush1.msra.mxu0 0.0
    %160 = vmatprep.subr.mxu0 0.0
    %161 = vmatpush1.msra.mxu0 0.0
    %162 = vmatprep.subr.mxu0 0.0
    %163 = vmatpush1.msra.mxu0 0.0
    %164 = vmatprep.subr.mxu0 0.0
    %165 = vmatpush1.msra.mxu0 0.0
    %166 = vmatprep.subr.mxu0 0.0
    %167 = vmatpush1.msra.mxu0 0.0
    %168 = vmatprep.subr.mxu0 0.0
    %169 = vmatpush1.msra.mxu0 0.0
    %170 = vmatprep.subr.mxu0 0.0
    %171 = vmatpush1.msra.mxu0 0.0
    %172 = vmatprep.subr.mxu0 0.0
    %173 = vmatpush1.msra.mxu0 0.0
    %174 = vmatprep.subr.mxu0 0.0
    %175 = vmatpush1.msra.mxu0 0.0
    %176 = vmatprep.subr.mxu0 0.0
    %177 = vmatpush1.msra.mxu0 0.0
    %178 = vmatprep.subr.mxu0 0.0
    %179 = vmatpush1.msra.mxu0 0.0
    %180 = vmatprep.subr.mxu0 0.0
    %181 = vmatpush1.msra.mxu0 0.0
    %182 = vmatprep.subr.mxu0 0.0
    %183 = vmatpush1.msra.mxu0 0.0
    %184 = vmatprep.subr.mxu0 0.0
    %185 = vmatpush1.msra.mxu0 0.0
    %186 = vmatprep.mubr.f32.mxu0 0.0
    %187 = vmatmul.mubr.f32.gmra.mrb[0].mxu0 %v120
    %v188 = vpop.f32.mrb[0].mxu0
    %v189 = vadd.f32 0.0, %v188
    %v190 = vpop.f32.mrb[0].mxu0
    %191 = vdwg.mxu0
    %v192 = vadd.f32 %v109, %v189
    %v193 = vtanh.pop %v192
    %v195 = vsel %vm118, %v193, 0
    %197 = vmatprep.subr.mxu0 0.0
    %198 = vmatpush1.msra.mxu0 %v27
    %199 = vmatprep.subr.mxu0 0.0
    %200 = vmatpush1.msra.mxu0 %v28
    %201 = vmatprep.subr.mxu0 0.0
    %202 = vmatpush1.msra.mxu0 %v29
    %203 = vmatprep.subr.mxu0 0.0
    %204 = vmatpush1.msra.mxu0 %v30
    %205 = vmatprep.subr.mxu0 0.0
    %206 = vmatpush1.msra.mxu0 0.0
    %207 = vmatprep.subr.mxu0 0.0
    %208 = vmatpush1.msra.mxu0 0.0
    %209 = vmatprep.subr.mxu0 0.0
    %210 = vmatpush1.msra.mxu0 0.0
    %211 = vmatprep.subr.mxu0 0.0
    %212 = vmatpush1.msra.mxu0 0.0
    %213 = vmatprep.subr.mxu0 0.0
    %214 = vmatpush1.msra.mxu0 0.0
    %215 = vmatprep.subr.mxu0 0.0
    %216 = vmatpush1.msra.mxu0 0.0
    %217 = vmatprep.subr.mxu0 0.0
    %218 = vmatpush1.msra.mxu0 0.0
    %219 = vmatprep.subr.mxu0 0.0
    %220 = vmatpush1.msra.mxu0 0.0
    %221 = vmatprep.subr.mxu0 0.0
    %222 = vmatpush1.msra.mxu0 0.0
    %223 = vmatprep.subr.mxu0 0.0
    %224 = vmatpush1.msra.mxu0 0.0
    %225 = vmatprep.subr.mxu0 0.0
    %226 = vmatpush1.msra.mxu0 0.0
    %227 = vmatprep.subr.mxu0 0.0
    %228 = vmatpush1.msra.mxu0 0.0
    %229 = vmatprep.subr.mxu0 0.0
    %230 = vmatpush1.msra.mxu0 0.0
    %231 = vmatprep.subr.mxu0 0.0
    %232 = vmatpush1.msra.mxu0 0.0
    %233 = vmatprep.subr.mxu0 0.0
    %234 = vmatpush1.msra.mxu0 0.0
    %235 = vmatprep.subr.mxu0 0.0
    %236 = vmatpush1.msra.mxu0 0.0
    %237 = vmatprep.subr.mxu0 0.0
    %238 = vmatpush1.msra.mxu0 0.0
    %239 = vmatprep.subr.mxu0 0.0
    %240 = vmatpush1.msra.mxu0 0.0
    %241 = vmatprep.subr.mxu0 0.0
    %242 = vmatpush1.msra.mxu0 0.0
    %243 = vmatprep.subr.mxu0 0.0
    %244 = vmatpush1.msra.mxu0 0.0
    %245 = vmatprep.subr.mxu0 0.0
    %246 = vmatpush1.msra.mxu0 0.0
    %247 = vmatprep.subr.mxu0 0.0
    %248 = vmatpush1.msra.mxu0 0.0
    %249 = vmatprep.subr.mxu0 0.0
    %250 = vmatpush1.msra.mxu0 0.0
    %251 = vmatprep.subr.mxu0 0.0
    %252 = vmatpush1.msra.mxu0 0.0
    %253 = vmatprep.subr.mxu0 0.0
    %254 = vmatpush1.msra.mxu0 0.0
    %255 = vmatprep.subr.mxu0 0.0
    %256 = vmatpush1.msra.mxu0 0.0
    %257 = vmatprep.subr.mxu0 0.0
    %258 = vmatpush1.msra.mxu0 0.0
    %259 = vmatprep.subr.mxu0 0.0
    %260 = vmatpush1.msra.mxu0 0.0
    %261 = vmatprep.mubr.f32.mxu0 0.0
    %262 = vmatmul.mubr.f32.gmra.mrb[0].mxu0 %v195
    %v263 = vpop.f32.mrb[0].mxu0
    %v264 = vadd.f32 0.0, %v263
    %v265 = vpop.f32.mrb[0].mxu0
    %266 = vdwg.mxu0
    %v268 = vrot.slane %v264, 6
    %v270 = vadd.f32 %v109, %v268
    %v271 = vtanh.pop %v270
    %v273 = vrot.slane %v271, 2
    %v274 = vsel %vm118, %v273, 0
    %276 = vmatprep.subr.mxu0 0.0
    %277 = vmatpush1.msra.mxu0 %v27
    %278 = vmatprep.subr.mxu0 0.0
    %279 = vmatpush1.msra.mxu0 %v28
    %280 = vmatprep.subr.mxu0 0.0
    %281 = vmatpush1.msra.mxu0 %v29
    %282 = vmatprep.subr.mxu0 0.0
    %283 = vmatpush1.msra.mxu0 %v30
    %284 = vmatprep.subr.mxu0 0.0
    %285 = vmatpush1.msra.mxu0 0.0
    %286 = vmatprep.subr.mxu0 0.0
    %287 = vmatpush1.msra.mxu0 0.0
    %288 = vmatprep.subr.mxu0 0.0
    %289 = vmatpush1.msra.mxu0 0.0
    %290 = vmatprep.subr.mxu0 0.0
    %291 = vmatpush1.msra.mxu0 0.0
    %292 = vmatprep.subr.mxu0 0.0
    %293 = vmatpush1.msra.mxu0 0.0
    %294 = vmatprep.subr.mxu0 0.0
    %295 = vmatpush1.msra.mxu0 0.0
    %296 = vmatprep.subr.mxu0 0.0
    %297 = vmatpush1.msra.mxu0 0.0
    %298 = vmatprep.subr.mxu0 0.0
    %299 = vmatpush1.msra.mxu0 0.0
    %300 = vmatprep.subr.mxu0 0.0
    %301 = vmatpush1.msra.mxu0 0.0
    %302 = vmatprep.subr.mxu0 0.0
    %303 = vmatpush1.msra.mxu0 0.0
    %304 = vmatprep.subr.mxu0 0.0
    %305 = vmatpush1.msra.mxu0 0.0
    %306 = vmatprep.subr.mxu0 0.0
    %307 = vmatpush1.msra.mxu0 0.0
    %308 = vmatprep.subr.mxu0 0.0
    %309 = vmatpush1.msra.mxu0 0.0
    %310 = vmatprep.subr.mxu0 0.0
    %311 = vmatpush1.msra.mxu0 0.0
    %312 = vmatprep.subr.mxu0 0.0
    %313 = vmatpush1.msra.mxu0 0.0
    %314 = vmatprep.subr.mxu0 0.0
    %315 = vmatpush1.msra.mxu0 0.0
    %316 = vmatprep.subr.mxu0 0.0
    %317 = vmatpush1.msra.mxu0 0.0
    %318 = vmatprep.subr.mxu0 0.0
    %319 = vmatpush1.msra.mxu0 0.0
    %320 = vmatprep.subr.mxu0 0.0
    %321 = vmatpush1.msra.mxu0 0.0
    %322 = vmatprep.subr.mxu0 0.0
    %323 = vmatpush1.msra.mxu0 0.0
    %324 = vmatprep.subr.mxu0 0.0
    %325 = vmatpush1.msra.mxu0 0.0
    %326 = vmatprep.subr.mxu0 0.0
    %327 = vmatpush1.msra.mxu0 0.0
    %328 = vmatprep.subr.mxu0 0.0
    %329 = vmatpush1.msra.mxu0 0.0
    %330 = vmatprep.subr.mxu0 0.0
    %331 = vmatpush1.msra.mxu0 0.0
    %332 = vmatprep.subr.mxu0 0.0
    %333 = vmatpush1.msra.mxu0 0.0
    %334 = vmatprep.subr.mxu0 0.0
    %335 = vmatpush1.msra.mxu0 0.0
    %336 = vmatprep.subr.mxu0 0.0
    %337 = vmatpush1.msra.mxu0 0.0
    %338 = vmatprep.subr.mxu0 0.0
    %339 = vmatpush1.msra.mxu0 0.0
    %340 = vmatprep.mubr.f32.mxu0 0.0
    %341 = vmatmul.mubr.f32.gmra.mrb[0].mxu0 %v274
    %v342 = vpop.f32.mrb[0].mxu0
    %v343 = vadd.f32 0.0, %v342
    %v344 = vpop.f32.mrb[0].mxu0
    %345 = vdwg.mxu0
    %v347 = vrot.slane %v343, 4
    %v349 = vadd.f32 %v109, %v347
    %v350 = vtanh.pop %v349
    %v352 = vrot.slane %v350, 4
    %v353 = vsel %vm118, %v352, 0
    %355 = vmatprep.subr.mxu0 0.0
    %356 = vmatpush1.msra.mxu0 %v27
    %357 = vmatprep.subr.mxu0 0.0
    %358 = vmatpush1.msra.mxu0 %v28
    %359 = vmatprep.subr.mxu0 0.0
    %360 = vmatpush1.msra.mxu0 %v29
    %361 = vmatprep.subr.mxu0 0.0
    %362 = vmatpush1.msra.mxu0 %v30
    %363 = vmatprep.subr.mxu0 0.0
    %364 = vmatpush1.msra.mxu0 0.0
    %365 = vmatprep.subr.mxu0 0.0
    %366 = vmatpush1.msra.mxu0 0.0
    %367 = vmatprep.subr.mxu0 0.0
    %368 = vmatpush1.msra.mxu0 0.0
    %369 = vmatprep.subr.mxu0 0.0
    %370 = vmatpush1.msra.mxu0 0.0
    %371 = vmatprep.subr.mxu0 0.0
    %372 = vmatpush1.msra.mxu0 0.0
    %373 = vmatprep.subr.mxu0 0.0
    %374 = vmatpush1.msra.mxu0 0.0
    %375 = vmatprep.subr.mxu0 0.0
    %376 = vmatpush1.msra.mxu0 0.0
    %377 = vmatprep.subr.mxu0 0.0
    %378 = vmatpush1.msra.mxu0 0.0
    %379 = vmatprep.subr.mxu0 0.0
    %380 = vmatpush1.msra.mxu0 0.0
    %381 = vmatprep.subr.mxu0 0.0
    %382 = vmatpush1.msra.mxu0 0.0
    %383 = vmatprep.subr.mxu0 0.0
    %384 = vmatpush1.msra.mxu0 0.0
    %385 = vmatprep.subr.mxu0 0.0
    %386 = vmatpush1.msra.mxu0 0.0
    %387 = vmatprep.subr.mxu0 0.0
    %388 = vmatpush1.msra.mxu0 0.0
    %389 = vmatprep.subr.mxu0 0.0
    %390 = vmatpush1.msra.mxu0 0.0
    %391 = vmatprep.subr.mxu0 0.0
    %392 = vmatpush1.msra.mxu0 0.0
    %393 = vmatprep.subr.mxu0 0.0
    %394 = vmatpush1.msra.mxu0 0.0
    %395 = vmatprep.subr.mxu0 0.0
    %396 = vmatpush1.msra.mxu0 0.0
    %397 = vmatprep.subr.mxu0 0.0
    %398 = vmatpush1.msra.mxu0 0.0
    %399 = vmatprep.subr.mxu0 0.0
    %400 = vmatpush1.msra.mxu0 0.0
    %401 = vmatprep.subr.mxu0 0.0
    %402 = vmatpush1.msra.mxu0 0.0
    %403 = vmatprep.subr.mxu0 0.0
    %404 = vmatpush1.msra.mxu0 0.0
    %405 = vmatprep.subr.mxu0 0.0
    %406 = vmatpush1.msra.mxu0 0.0
    %407 = vmatprep.subr.mxu0 0.0
    %408 = vmatpush1.msra.mxu0 0.0
    %409 = vmatprep.subr.mxu0 0.0
    %410 = vmatpush1.msra.mxu0 0.0
    %411 = vmatprep.subr.mxu0 0.0
    %412 = vmatpush1.msra.mxu0 0.0
    %413 = vmatprep.subr.mxu0 0.0
    %414 = vmatpush1.msra.mxu0 0.0
    %415 = vmatprep.subr.mxu0 0.0
    %416 = vmatpush1.msra.mxu0 0.0
    %417 = vmatprep.subr.mxu0 0.0
    %418 = vmatpush1.msra.mxu0 0.0
    %419 = vmatprep.mubr.f32.mxu0 0.0
    %420 = vmatmul.mubr.f32.gmra.mrb[0].mxu0 %v353
    %v421 = vpop.f32.mrb[0].mxu0
    %v422 = vadd.f32 0.0, %v421
    %v423 = vpop.f32.mrb[0].mxu0
    %424 = vdwg.mxu0
    %v426 = vrot.slane %v422, 2
    %v428 = vadd.f32 %v109, %v426
    %v429 = vtanh.pop %v428
    %v431 = vrot.slane %v429, 6
    %v432 = vsel %vm118, %v431, 0
    %434 = vmatprep.subr.mxu0 0.0
    %435 = vmatpush1.msra.mxu0 %v27
    %436 = vmatprep.subr.mxu0 0.0
    %437 = vmatpush1.msra.mxu0 %v28
    %438 = vmatprep.subr.mxu0 0.0
    %439 = vmatpush1.msra.mxu0 %v29
    %440 = vmatprep.subr.mxu0 0.0
    %441 = vmatpush1.msra.mxu0 %v30
    %442 = vmatprep.subr.mxu0 0.0
    %443 = vmatpush1.msra.mxu0 0.0
    %444 = vmatprep.subr.mxu0 0.0
    %445 = vmatpush1.msra.mxu0 0.0
    %446 = vmatprep.subr.mxu0 0.0
    %447 = vmatpush1.msra.mxu0 0.0
    %448 = vmatprep.subr.mxu0 0.0
    %449 = vmatpush1.msra.mxu0 0.0
    %450 = vmatprep.subr.mxu0 0.0
    %451 = vmatpush1.msra.mxu0 0.0
    %452 = vmatprep.subr.mxu0 0.0
    %453 = vmatpush1.msra.mxu0 0.0
    %454 = vmatprep.subr.mxu0 0.0
    %455 = vmatpush1.msra.mxu0 0.0
    %456 = vmatprep.subr.mxu0 0.0
    %457 = vmatpush1.msra.mxu0 0.0
    %458 = vmatprep.subr.mxu0 0.0
    %459 = vmatpush1.msra.mxu0 0.0
    %460 = vmatprep.subr.mxu0 0.0
    %461 = vmatpush1.msra.mxu0 0.0
    %462 = vmatprep.subr.mxu0 0.0
    %463 = vmatpush1.msra.mxu0 0.0
    %464 = vmatprep.subr.mxu0 0.0
    %465 = vmatpush1.msra.mxu0 0.0
    %466 = vmatprep.subr.mxu0 0.0
    %467 = vmatpush1.msra.mxu0 0.0
    %468 = vmatprep.subr.mxu0 0.0
    %469 = vmatpush1.msra.mxu0 0.0
    %470 = vmatprep.subr.mxu0 0.0
    %471 = vmatpush1.msra.mxu0 0.0
    %472 = vmatprep.subr.mxu0 0.0
    %473 = vmatpush1.msra.mxu0 0.0
    %474 = vmatprep.subr.mxu0 0.0
    %475 = vmatpush1.msra.mxu0 0.0
    %476 = vmatprep.subr.mxu0 0.0
    %477 = vmatpush1.msra.mxu0 0.0
    %478 = vmatprep.subr.mxu0 0.0
    %479 = vmatpush1.msra.mxu0 0.0
    %480 = vmatprep.subr.mxu0 0.0
    %481 = vmatpush1.msra.mxu0 0.0
    %482 = vmatprep.subr.mxu0 0.0
    %483 = vmatpush1.msra.mxu0 0.0
    %484 = vmatprep.subr.mxu0 0.0
    %485 = vmatpush1.msra.mxu0 0.0
    %486 = vmatprep.subr.mxu0 0.0
    %487 = vmatpush1.msra.mxu0 0.0
    %488 = vmatprep.subr.mxu0 0.0
    %489 = vmatpush1.msra.mxu0 0.0
    %490 = vmatprep.subr.mxu0 0.0
    %491 = vmatpush1.msra.mxu0 0.0
    %492 = vmatprep.subr.mxu0 0.0
    %493 = vmatpush1.msra.mxu0 0.0
    %494 = vmatprep.subr.mxu0 0.0
    %495 = vmatpush1.msra.mxu0 0.0
    %496 = vmatprep.subr.mxu0 0.0
    %497 = vmatpush1.msra.mxu0 0.0
    %498 = vmatprep.mubr.f32.mxu0 0.0
    %499 = vmatmul.mubr.f32.gmra.mrb[0].mxu0 %v432
    %v500 = vpop.f32.mrb[0].mxu0
    %v501 = vadd.f32 0.0, %v500
    %v502 = vpop.f32.mrb[0].mxu0
    %503 = vdwg.mxu0
    %v504 = vadd.f32 %v114, %v501
    %v505 = vtanh.pop %v504
    %v507 = vsel %vm118, %v505, 0
    %509 = vmatprep.subr.mxu0 0.0
    %510 = vmatpush1.msra.mxu0 %v27
    %511 = vmatprep.subr.mxu0 0.0
    %512 = vmatpush1.msra.mxu0 %v28
    %513 = vmatprep.subr.mxu0 0.0
    %514 = vmatpush1.msra.mxu0 %v29
    %515 = vmatprep.subr.mxu0 0.0
    %516 = vmatpush1.msra.mxu0 %v30
    %517 = vmatprep.subr.mxu0 0.0
    %518 = vmatpush1.msra.mxu0 0.0
    %519 = vmatprep.subr.mxu0 0.0
    %520 = vmatpush1.msra.mxu0 0.0
    %521 = vmatprep.subr.mxu0 0.0
    %522 = vmatpush1.msra.mxu0 0.0
    %523 = vmatprep.subr.mxu0 0.0
    %524 = vmatpush1.msra.mxu0 0.0
    %525 = vmatprep.subr.mxu0 0.0
    %526 = vmatpush1.msra.mxu0 0.0
    %527 = vmatprep.subr.mxu0 0.0
    %528 = vmatpush1.msra.mxu0 0.0
    %529 = vmatprep.subr.mxu0 0.0
    %530 = vmatpush1.msra.mxu0 0.0
    %531 = vmatprep.subr.mxu0 0.0
    %532 = vmatpush1.msra.mxu0 0.0
    %533 = vmatprep.subr.mxu0 0.0
    %534 = vmatpush1.msra.mxu0 0.0
    %535 = vmatprep.subr.mxu0 0.0
    %536 = vmatpush1.msra.mxu0 0.0
    %537 = vmatprep.subr.mxu0 0.0
    %538 = vmatpush1.msra.mxu0 0.0
    %539 = vmatprep.subr.mxu0 0.0
    %540 = vmatpush1.msra.mxu0 0.0
    %541 = vmatprep.subr.mxu0 0.0
    %542 = vmatpush1.msra.mxu0 0.0
    %543 = vmatprep.subr.mxu0 0.0
    %544 = vmatpush1.msra.mxu0 0.0
    %545 = vmatprep.subr.mxu0 0.0
    %546 = vmatpush1.msra.mxu0 0.0
    %547 = vmatprep.subr.mxu0 0.0
    %548 = vmatpush1.msra.mxu0 0.0
    %549 = vmatprep.subr.mxu0 0.0
    %550 = vmatpush1.msra.mxu0 0.0
    %551 = vmatprep.subr.mxu0 0.0
    %552 = vmatpush1.msra.mxu0 0.0
    %553 = vmatprep.subr.mxu0 0.0
    %554 = vmatpush1.msra.mxu0 0.0
    %555 = vmatprep.subr.mxu0 0.0
    %556 = vmatpush1.msra.mxu0 0.0
    %557 = vmatprep.subr.mxu0 0.0
    %558 = vmatpush1.msra.mxu0 0.0
    %559 = vmatprep.subr.mxu0 0.0
    %560 = vmatpush1.msra.mxu0 0.0
    %561 = vmatprep.subr.mxu0 0.0
    %562 = vmatpush1.msra.mxu0 0.0
    %563 = vmatprep.subr.mxu0 0.0
    %564 = vmatpush1.msra.mxu0 0.0
    %565 = vmatprep.subr.mxu0 0.0
    %566 = vmatpush1.msra.mxu0 0.0
    %567 = vmatprep.subr.mxu0 0.0
    %568 = vmatpush1.msra.mxu0 0.0
    %569 = vmatprep.subr.mxu0 0.0
    %570 = vmatpush1.msra.mxu0 0.0
    %571 = vmatprep.subr.mxu0 0.0
    %572 = vmatpush1.msra.mxu0 0.0
    %573 = vmatprep.mubr.f32.mxu0 0.0
    %574 = vmatmul.mubr.f32.gmra.mrb[0].mxu0 %v507
    %v575 = vpop.f32.mrb[0].mxu0
    %v576 = vadd.f32 0.0, %v575
    %v577 = vpop.f32.mrb[0].mxu0
    %578 = vdwg.mxu0
    %v580 = vrot.slane %v576, 6
    %v582 = vadd.f32 %v114, %v580
    %v583 = vtanh.pop %v582
    %v585 = vrot.slane %v583, 2
    %v586 = vsel %vm118, %v585, 0
    %588 = vmatprep.subr.mxu0 0.0
    %589 = vmatpush1.msra.mxu0 %v27
    %590 = vmatprep.subr.mxu0 0.0
    %591 = vmatpush1.msra.mxu0 %v28
    %592 = vmatprep.subr.mxu0 0.0
    %593 = vmatpush1.msra.mxu0 %v29
    %594 = vmatprep.subr.mxu0 0.0
    %595 = vmatpush1.msra.mxu0 %v30
    %596 = vmatprep.subr.mxu0 0.0
    %597 = vmatpush1.msra.mxu0 0.0
    %598 = vmatprep.subr.mxu0 0.0
    %599 = vmatpush1.msra.mxu0 0.0
    %600 = vmatprep.subr.mxu0 0.0
    %601 = vmatpush1.msra.mxu0 0.0
    %602 = vmatprep.subr.mxu0 0.0
    %603 = vmatpush1.msra.mxu0 0.0
    %604 = vmatprep.subr.mxu0 0.0
    %605 = vmatpush1.msra.mxu0 0.0
    %606 = vmatprep.subr.mxu0 0.0
    %607 = vmatpush1.msra.mxu0 0.0
    %608 = vmatprep.subr.mxu0 0.0
    %609 = vmatpush1.msra.mxu0 0.0
    %610 = vmatprep.subr.mxu0 0.0
    %611 = vmatpush1.msra.mxu0 0.0
    %612 = vmatprep.subr.mxu0 0.0
    %613 = vmatpush1.msra.mxu0 0.0
    %614 = vmatprep.subr.mxu0 0.0
    %615 = vmatpush1.msra.mxu0 0.0
    %616 = vmatprep.subr.mxu0 0.0
    %617 = vmatpush1.msra.mxu0 0.0
    %618 = vmatprep.subr.mxu0 0.0
    %619 = vmatpush1.msra.mxu0 0.0
    %620 = vmatprep.subr.mxu0 0.0
    %621 = vmatpush1.msra.mxu0 0.0
    %622 = vmatprep.subr.mxu0 0.0
    %623 = vmatpush1.msra.mxu0 0.0
    %624 = vmatprep.subr.mxu0 0.0
    %625 = vmatpush1.msra.mxu0 0.0
    %626 = vmatprep.subr.mxu0 0.0
    %627 = vmatpush1.msra.mxu0 0.0
    %628 = vmatprep.subr.mxu0 0.0
    %629 = vmatpush1.msra.mxu0 0.0
    %630 = vmatprep.subr.mxu0 0.0
    %631 = vmatpush1.msra.mxu0 0.0
    %632 = vmatprep.subr.mxu0 0.0
    %633 = vmatpush1.msra.mxu0 0.0
    %634 = vmatprep.subr.mxu0 0.0
    %635 = vmatpush1.msra.mxu0 0.0
    %636 = vmatprep.subr.mxu0 0.0
    %637 = vmatpush1.msra.mxu0 0.0
    %638 = vmatprep.subr.mxu0 0.0
    %639 = vmatpush1.msra.mxu0 0.0
    %640 = vmatprep.subr.mxu0 0.0
    %641 = vmatpush1.msra.mxu0 0.0
    %642 = vmatprep.subr.mxu0 0.0
    %643 = vmatpush1.msra.mxu0 0.0
    %644 = vmatprep.subr.mxu0 0.0
    %645 = vmatpush1.msra.mxu0 0.0
    %646 = vmatprep.subr.mxu0 0.0
    %647 = vmatpush1.msra.mxu0 0.0
    %648 = vmatprep.subr.mxu0 0.0
    %649 = vmatpush1.msra.mxu0 0.0
    %650 = vmatprep.subr.mxu0 0.0
    %651 = vmatpush1.msra.mxu0 0.0
    %652 = vmatprep.mubr.f32.mxu0 0.0
    %653 = vmatmul.mubr.f32.gmra.mrb[0].mxu0 %v586
    %v654 = vpop.f32.mrb[0].mxu0
    %v655 = vadd.f32 0.0, %v654
    %v656 = vpop.f32.mrb[0].mxu0
    %657 = vdwg.mxu0
    %v659 = vrot.slane %v655, 4
    %v661 = vadd.f32 %v114, %v659
    %v662 = vtanh.pop %v661
    %v664 = vrot.slane %v662, 4
    %v665 = vsel %vm118, %v664, 0
    %667 = vmatprep.subr.mxu0 0.0
    %668 = vmatpush1.msra.mxu0 %v27
    %669 = vmatprep.subr.mxu0 0.0
    %670 = vmatpush1.msra.mxu0 %v28
    %671 = vmatprep.subr.mxu0 0.0
    %672 = vmatpush1.msra.mxu0 %v29
    %673 = vmatprep.subr.mxu0 0.0
    %674 = vmatpush1.msra.mxu0 %v30
    %675 = vmatprep.subr.mxu0 0.0
    %676 = vmatpush1.msra.mxu0 0.0
    %677 = vmatprep.subr.mxu0 0.0
    %678 = vmatpush1.msra.mxu0 0.0
    %679 = vmatprep.subr.mxu0 0.0
    %680 = vmatpush1.msra.mxu0 0.0
    %681 = vmatprep.subr.mxu0 0.0
    %682 = vmatpush1.msra.mxu0 0.0
    %683 = vmatprep.subr.mxu0 0.0
    %684 = vmatpush1.msra.mxu0 0.0
    %685 = vmatprep.subr.mxu0 0.0
    %686 = vmatpush1.msra.mxu0 0.0
    %687 = vmatprep.subr.mxu0 0.0
    %688 = vmatpush1.msra.mxu0 0.0
    %689 = vmatprep.subr.mxu0 0.0
    %690 = vmatpush1.msra.mxu0 0.0
    %691 = vmatprep.subr.mxu0 0.0
    %692 = vmatpush1.msra.mxu0 0.0
    %693 = vmatprep.subr.mxu0 0.0
    %694 = vmatpush1.msra.mxu0 0.0
    %695 = vmatprep.subr.mxu0 0.0
    %696 = vmatpush1.msra.mxu0 0.0
    %697 = vmatprep.subr.mxu0 0.0
    %698 = vmatpush1.msra.mxu0 0.0
    %699 = vmatprep.subr.mxu0 0.0
    %700 = vmatpush1.msra.mxu0 0.0
    %701 = vmatprep.subr.mxu0 0.0
    %702 = vmatpush1.msra.mxu0 0.0
    %703 = vmatprep.subr.mxu0 0.0
    %704 = vmatpush1.msra.mxu0 0.0
    %705 = vmatprep.subr.mxu0 0.0
    %706 = vmatpush1.msra.mxu0 0.0
    %707 = vmatprep.subr.mxu0 0.0
    %708 = vmatpush1.msra.mxu0 0.0
    %709 = vmatprep.subr.mxu0 0.0
    %710 = vmatpush1.msra.mxu0 0.0
    %711 = vmatprep.subr.mxu0 0.0
    %712 = vmatpush1.msra.mxu0 0.0
    %713 = vmatprep.subr.mxu0 0.0
    %714 = vmatpush1.msra.mxu0 0.0
    %715 = vmatprep.subr.mxu0 0.0
    %716 = vmatpush1.msra.mxu0 0.0
    %717 = vmatprep.subr.mxu0 0.0
    %718 = vmatpush1.msra.mxu0 0.0
    %719 = vmatprep.subr.mxu0 0.0
    %720 = vmatpush1.msra.mxu0 0.0
    %721 = vmatprep.subr.mxu0 0.0
    %722 = vmatpush1.msra.mxu0 0.0
    %723 = vmatprep.subr.mxu0 0.0
    %724 = vmatpush1.msra.mxu0 0.0
    %725 = vmatprep.subr.mxu0 0.0
    %726 = vmatpush1.msra.mxu0 0.0
    %727 = vmatprep.subr.mxu0 0.0
    %728 = vmatpush1.msra.mxu0 0.0
    %729 = vmatprep.subr.mxu0 0.0
    %730 = vmatpush1.msra.mxu0 0.0
    %731 = vmatprep.mubr.f32.mxu0 0.0
    %732 = vmatmul.mubr.f32.gmra.mrb[0].mxu0 %v665
    %v733 = vpop.f32.mrb[0].mxu0
    %v734 = vadd.f32 0.0, %v733
    %v735 = vpop.f32.mrb[0].mxu0
    %736 = vdwg.mxu0
    %v738 = vrot.slane %v734, 2
    %v740 = vadd.f32 %v114, %v738
    %v741 = vtanh.pop %v740
    %vm742 = vcmask 261126
    %743 = vst.msk [vmem:[#allocation2 - $0x6] sm:$0xc0] %vm742, %v741
    %vm744 = vcmask 1041408
    %v745 = vsel %vm744, %v193, %v271
    %v746 = vsel %vm38, %v745, %v350
    %vm747 = vcmask 1045504
    %v748 = vsel %vm747, %v746, %v429
    %v749 = vsel %vm744, %v505, %v583
    %v750 = vsel %vm38, %v749, %v662
    %v751 = vsel %vm747, %v750, %v741
    %752 = vst.msk [vmem:[%s5] sm:$0xff] %vm118, %v748
    %753 = vst.msk [vmem:[%s5 + $0x8] sm:$0xff] %vm118, %v751
    %v754 = vld [vmem:[%s4] sm:$0xff]
    %v755 = vld [vmem:[%s4 + $0x8] sm:$0xff]
    %v756 = vld [vmem:[%s4 + $0x10] sm:$0xff]
    %v757 = vld [vmem:[%s4 + $0x18] sm:$0xff]
    %v759 = vsel %vm118, %v748, 0
    %v762 = vsel %vm118, %v751, 0
    %764 = vmatprep.subr.mxu0 0.0
    %765 = vmatpush1.msra.mxu0 %v754
    %766 = vmatprep.subr.mxu0 0.0
    %767 = vmatpush1.msra.mxu0 %v755
    %768 = vmatprep.subr.mxu0 0.0
    %769 = vmatpush1.msra.mxu0 %v756
    %770 = vmatprep.subr.mxu0 0.0
    %771 = vmatpush1.msra.mxu0 %v757
    %772 = vmatprep.subr.mxu0 0.0
    %773 = vmatpush1.msra.mxu0 0.0
    %774 = vmatprep.subr.mxu0 0.0
    %775 = vmatpush1.msra.mxu0 0.0
    %776 = vmatprep.subr.mxu0 0.0
    %777 = vmatpush1.msra.mxu0 0.0
    %778 = vmatprep.subr.mxu0 0.0
    %779 = vmatpush1.msra.mxu0 0.0
    %780 = vmatprep.subr.mxu0 0.0
    %781 = vmatpush1.msra.mxu0 0.0
    %782 = vmatprep.subr.mxu0 0.0
    %783 = vmatpush1.msra.mxu0 0.0
    %784 = vmatprep.subr.mxu0 0.0
    %785 = vmatpush1.msra.mxu0 0.0
    %786 = vmatprep.subr.mxu0 0.0
    %787 = vmatpush1.msra.mxu0 0.0
    %788 = vmatprep.subr.mxu0 0.0
    %789 = vmatpush1.msra.mxu0 0.0
    %790 = vmatprep.subr.mxu0 0.0
    %791 = vmatpush1.msra.mxu0 0.0
    %792 = vmatprep.subr.mxu0 0.0
    %793 = vmatpush1.msra.mxu0 0.0
    %794 = vmatprep.subr.mxu0 0.0
    %795 = vmatpush1.msra.mxu0 0.0
    %796 = vmatprep.subr.mxu0 0.0
    %797 = vmatpush1.msra.mxu0 0.0
    %798 = vmatprep.subr.mxu0 0.0
    %799 = vmatpush1.msra.mxu0 0.0
    %800 = vmatprep.subr.mxu0 0.0
    %801 = vmatpush1.msra.mxu0 0.0
    %802 = vmatprep.subr.mxu0 0.0
    %803 = vmatpush1.msra.mxu0 0.0
    %804 = vmatprep.subr.mxu0 0.0
    %805 = vmatpush1.msra.mxu0 0.0
    %806 = vmatprep.subr.mxu0 0.0
    %807 = vmatpush1.msra.mxu0 0.0
    %808 = vmatprep.subr.mxu0 0.0
    %809 = vmatpush1.msra.mxu0 0.0
    %810 = vmatprep.subr.mxu0 0.0
    %811 = vmatpush1.msra.mxu0 0.0
    %812 = vmatprep.subr.mxu0 0.0
    %813 = vmatpush1.msra.mxu0 0.0
    %814 = vmatprep.subr.mxu0 0.0
    %815 = vmatpush1.msra.mxu0 0.0
    %816 = vmatprep.subr.mxu0 0.0
    %817 = vmatpush1.msra.mxu0 0.0
    %818 = vmatprep.subr.mxu0 0.0
    %819 = vmatpush1.msra.mxu0 0.0
    %820 = vmatprep.subr.mxu0 0.0
    %821 = vmatpush1.msra.mxu0 0.0
    %822 = vmatprep.subr.mxu0 0.0
    %823 = vmatpush1.msra.mxu0 0.0
    %824 = vmatprep.subr.mxu0 0.0
    %825 = vmatpush1.msra.mxu0 0.0
    %826 = vmatprep.subr.mxu0 0.0
    %827 = vmatpush1.msra.mxu0 0.0
    %828 = vmatprep.mubr.f32.mxu0 0.0
    %829 = vmatmul.mubr.f32.gmra.mrb[0].mxu0 %v759
    %v830 = vpop.f32.mrb[0].mxu0
    %v831 = vadd.f32 0.0, %v830
    %v832 = vpop.f32.mrb[0].mxu0
    %833 = vmatprep.mubr.f32.mxu0 0.0
    %834 = vmatmul.mubr.f32.gmra.mrb[0].mxu0 %v762
    %v835 = vpop.f32.mrb[0].mxu0
    %v836 = vadd.f32 0.0, %v835
    %v837 = vpop.f32.mrb[0].mxu0
    %838 = vdwg.mxu0
    %839 = vst.msk [vmem:[%s6] sm:$0xff] %vm31, %v831
    %840 = vst.msk [vmem:[%s6 + $0x8] sm:$0xff] %vm31, %v836
    // Predicated region
    $region22: #{rnn_model_climate_forward.1} parent=1 // pred_check
      _
    $region23: #{rnn_model_climate_forward.1} parent=1 // pred_check_branch
      %842 = sbr.rel (0) target = $region25
    $region24: #{rnn_model_climate_forward.1} parent=1 // pred_region
      _
    $region25: #{rnn_model_climate_forward.1} parent=1 // pred_fallthru
      _
    // Predicated region
    $region26: #{rnn_model_climate_forward.1} parent=1 // pred_check
      _
    $region27: #{rnn_model_climate_forward.1} parent=1 // pred_check_branch
      %844 = sbr.rel (0) target = $region29
    $region28: #{rnn_model_climate_forward.1} parent=1 // pred_region
      _
    $region29: #{rnn_model_climate_forward.1} parent=1 // pred_fallthru
      _
    // Predicated region
    $region30: #{rnn_model_climate_forward.1} parent=1 // pred_check
      _
    $region31: #{rnn_model_climate_forward.1} parent=1 // pred_check_branch
      %846 = sbr.rel (0) target = $region33
    $region32: #{rnn_model_climate_forward.1} parent=1 // pred_region
      %s848 = ssub.s32 32, 32
      %849 = vsyncadd [#allocation3], %s848
      %s851 = sshll.u32 [#allocation2], 4
      %s852 = int_to_ptr.vmem [resolvable:$true] %s851
      %854 = dma.vmem_to_hbm [thread:$0]  %s852, 32, %s7, [#allocation3]
    $region33: #{rnn_model_climate_forward.1} parent=1 // pred_fallthru
      _
    // Predicated region
    $region34: #{rnn_model_climate_forward.1} parent=1 // pred_check
      _
    $region35: #{rnn_model_climate_forward.1} parent=1 // pred_check_branch
      %856 = sbr.rel (0) target = $region37
    $region36: #{rnn_model_climate_forward.1} parent=1 // pred_region
      _
    $region37: #{rnn_model_climate_forward.1} parent=1 // pred_fallthru
      _
    // Predicated region
    $region38: #{rnn_model_climate_forward.1} parent=1 // pred_check
      _
    $region39: #{rnn_model_climate_forward.1} parent=1 // pred_check_branch
      %858 = sbr.rel (0) target = $region41
    $region40: #{rnn_model_climate_forward.1} parent=1 // pred_region
      _
    $region41: #{rnn_model_climate_forward.1} parent=1 // pred_fallthru
      _
    // Predicated region
    $region42: #{rnn_model_climate_forward.1} parent=1 // pred_check
      _
    $region43: #{rnn_model_climate_forward.1} parent=1 // pred_check_branch
      %860 = sbr.rel (0) target = $region45
    $region44: #{rnn_model_climate_forward.1} parent=1 // pred_region
      %861 = dma.done [#allocation3], 32
    $region45: #{rnn_model_climate_forward.1} parent=1 // pred_fallthru
      _
    %862 = vsyncpa [#allocation3], 1

</llo_original>
